<compile_context>
chip_gen: v5e
topology: v5e:2x2
jax: 0.10.0
libtpu: 0.0.40
codegen_flags: <defaults>
</compile_context>

<pallas_src>
import functools

import jax
import jax.numpy as jnp
from jax import lax
from jax.experimental import pallas as pl
from jax.experimental.pallas import tpu as pltpu


# ----------------------------------------------------------------------------
# Kernel 1: loc2bbox decode + clamp-to-image + min-size mask
#   boxes coordinate-major (4, N): rows = (y1, x1, y2, x2), anchors on lanes.
# ----------------------------------------------------------------------------
def _decode_kernel(anchor_ref, loc_ref, score_ref, roi_ref, mscore_ref,
                   *, img_h, img_w, min_size):
    a = anchor_ref[...]            # (4, TN)  rows: y1, x1, y2, x2
    l = loc_ref[...]               # (4, TN)  rows: dy, dx, dh, dw

    ay1 = a[0:1, :]; ax1 = a[1:2, :]; ay2 = a[2:3, :]; ax2 = a[3:4, :]
    dy = l[0:1, :]; dx = l[1:2, :]; dh = l[2:3, :]; dw = l[3:4, :]

    src_h = ay2 - ay1
    src_w = ax2 - ax1
    src_cy = ay1 + 0.5 * src_h
    src_cx = ax1 + 0.5 * src_w

    cy = dy * src_h + src_cy
    cx = dx * src_w + src_cx
    h = jnp.exp(dh) * src_h
    w = jnp.exp(dw) * src_w

    # roi[:, 0::2].clamp_(0, img_size[0]); roi[:, 1::2].clamp_(0, img_size[1])
    y1 = jnp.clip(cy - 0.5 * h, 0.0, img_h)
    x1 = jnp.clip(cx - 0.5 * w, 0.0, img_w)
    y2 = jnp.clip(cy + 0.5 * h, 0.0, img_h)
    x2 = jnp.clip(cx + 0.5 * w, 0.0, img_w)

    keep = ((y2 - y1) >= min_size) & ((x2 - x1) >= min_size)

    # one unmasked full-block store
    roi_ref[...] = jnp.concatenate([y1, x1, y2, x2], axis=0)
    # filtered-out boxes get score -inf so they sort to the end (emulates roi[keep])
    mscore_ref[...] = jnp.where(keep, score_ref[...], -jnp.inf)


def decode_rois(anchor_t, loc_t, score_2d, img_h, img_w, min_size, tn):
    n_pad = anchor_t.shape[1]
    grid = (n_pad // tn,)
    kernel = functools.partial(_decode_kernel, img_h=float(img_h),
                               img_w=float(img_w), min_size=float(min_size))
    roi_t, mscore = pl.pallas_call(
        kernel,
        out_shape=(jax.ShapeDtypeStruct((4, n_pad), jnp.float32),
                   jax.ShapeDtypeStruct((1, n_pad), jnp.float32)),
        grid=grid,
        in_specs=[pl.BlockSpec((4, tn), lambda i: (0, i)),
                  pl.BlockSpec((4, tn), lambda i: (0, i)),
                  pl.BlockSpec((1, tn), lambda i: (0, i))],
        out_specs=(pl.BlockSpec((4, tn), lambda i: (0, i)),
                   pl.BlockSpec((1, tn), lambda i: (0, i))),
        compiler_params=pltpu.CompilerParams(dimension_semantics=("parallel",)),
    )(anchor_t, loc_t, score_2d)
    return roi_t, mscore[0]


# ----------------------------------------------------------------------------
# Kernel 2: fused blocked greedy NMS (exact greedy semantics, no K x K in HBM)
#   grid axis = block index (sequential: "arbitrary" — the suppressed-mask
#   scratch carries state from block b to block b+1).
# ----------------------------------------------------------------------------
def _nms_kernel(rows_ref, cols_ref, valid_ref, keep_ref,
                supp_ref, mask_ref, rowb_ref, *, thresh, nb, blk):
    b = pl.program_id(0)

    @pl.when(b == 0)
    def _():
        supp_ref[...] = jnp.zeros_like(supp_ref)

    # IoU(a, b) > t   <=>   inter > t/(1+t) * (area_a + area_b)   (no divide, exact)
    t2 = thresh / (1.0 + thresh)

    rows = rows_ref[...]                                   # (blk, 4)  row-major boxes
    ry1 = rows[:, 0:1]; rx1 = rows[:, 1:2]; ry2 = rows[:, 2:3]; rx2 = rows[:, 3:4]
    ta_r = t2 * ((ry2 - ry1) * (rx2 - rx1))                # (blk, 1)

    cb = cols_ref[b]                                       # (4, blk)  same block, lane-major
    cy1 = cb[0:1, :]; cx1 = cb[1:2, :]; cy2 = cb[2:3, :]; cx2 = cb[3:4, :]
    ta_c = t2 * ((cy2 - cy1) * (cx2 - cx1))                # (1, blk)

    ih = jnp.maximum(jnp.minimum(ry2, cy2) - jnp.maximum(ry1, cy1), 0.0)
    iw = jnp.maximum(jnp.minimum(rx2, cx2) - jnp.maximum(rx1, cx1), 0.0)
    inter = ih * iw                                        # (blk, blk)

    sub_i = lax.broadcasted_iota(jnp.int32, (blk, blk), 0)
    lan_j = lax.broadcasted_iota(jnp.int32, (blk, blk), 1)
    # mask[i, j] = 1.0 iff box i would suppress later box j of the same block
    mask_ref[...] = jnp.where((inter > ta_r + ta_c) & (lan_j > sub_i), 1.0, 0.0)

    # ---- exact greedy scan inside this block (fully unrolled, static offsets) ----
    # alive starts at "valid and not suppressed by any earlier block"
    alive = valid_ref[...] * (1.0 - supp_ref[b])           # (1, blk)
    for i in range(blk):
        row = mask_ref[pl.ds(i, 1), :]                     # static row load, off the chain
        alive_i = alive[:, i:i + 1]                        # (1, 1) static lane slice
        alive = alive * (1.0 - row * alive_i)              # 0/1 arithmetic, short chain
    keep_ref[...] = alive

    # kept boxes of this block as a (blk, 1) column (diagonal select + lane reduce)
    alive_col = jnp.max(jnp.where(sub_i == lan_j, alive, 0.0), axis=1, keepdims=True)

    # ---- stage the row-side (blk, blk) broadcasts ONCE (JAX does not CSE them) ----
    rowb_ref[0] = jnp.broadcast_to(ry1, (blk, blk))
    rowb_ref[1] = jnp.broadcast_to(rx1, (blk, blk))
    rowb_ref[2] = jnp.broadcast_to(ry2, (blk, blk))
    rowb_ref[3] = jnp.broadcast_to(rx2, (blk, blk))
    # fold the "row box kept?" gate into the threshold term: dead boxes never suppress
    rowb_ref[4] = jnp.broadcast_to(jnp.where(alive_col > 0.5, ta_r, jnp.inf), (blk, blk))

    # ---- vectorized suppression of later blocks by this block's kept boxes ----
    def later_block(c, carry):
        ry1b = rowb_ref[0]; rx1b = rowb_ref[1]
        ry2b = rowb_ref[2]; rx2b = rowb_ref[3]
        ta_rb = rowb_ref[4]
        oc = cols_ref[c]                                   # (4, blk)
        oy1 = oc[0:1, :]; ox1 = oc[1:2, :]; oy2 = oc[2:3, :]; ox2 = oc[3:4, :]
        ta_o = t2 * ((oy2 - oy1) * (ox2 - ox1))            # (1, blk)
        ih2 = jnp.maximum(jnp.minimum(ry2b, oy2) - jnp.maximum(ry1b, oy1), 0.0)
        iw2 = jnp.maximum(jnp.minimum(rx2b, ox2) - jnp.maximum(rx1b, ox1), 0.0)
        diff = ih2 * iw2 - (ta_rb + ta_o)                  # > 0  <=>  suppressed by a kept box
        hit = jnp.where(jnp.max(diff, axis=0, keepdims=True) > 0.0, 1.0, 0.0)   # (1, blk)
        supp_ref[c] = jnp.maximum(supp_ref[c], hit)
        return carry

    # only later blocks (upper triangle); earlier/current blocks are finalized
    lax.fori_loop(b + 1, nb, later_block, 0)


def fused_nms(roi_sorted, roi_sorted_t, valid_row, nms_thresh, blk=128):
    k_pad = roi_sorted.shape[0]
    nb = k_pad // blk
    # column-box view reorganized so each 128-box block is a leading-dim slice
    cols_blocked = roi_sorted_t.reshape(4, nb, blk).transpose(1, 0, 2)  # (nb, 4, blk)
    kernel = functools.partial(_nms_kernel, thresh=float(nms_thresh),
                               nb=nb, blk=blk)
    keep = pl.pallas_call(
        kernel,
        out_shape=jax.ShapeDtypeStruct((1, k_pad), jnp.float32),
        grid=(nb,),
        in_specs=[pl.BlockSpec((blk, 4), lambda i: (i, 0)),          # block's row boxes
                  pl.BlockSpec((nb, 4, blk), lambda i: (0, 0, 0)),   # all boxes, VMEM-resident
                  pl.BlockSpec((1, blk), lambda i: (0, i))],         # valid mask block
        out_specs=pl.BlockSpec((1, blk), lambda i: (0, i)),          # keep mask block
        scratch_shapes=[pltpu.VMEM((nb, 1, blk), jnp.float32),       # cross-block suppressed mask
                        pltpu.VMEM((blk, blk), jnp.float32),         # in-block suppression mask
                        pltpu.VMEM((5, blk, blk), jnp.float32)],     # hoisted row-side broadcasts
        compiler_params=pltpu.CompilerParams(dimension_semantics=("arbitrary",)),
    )(roi_sorted, cols_blocked, valid_row)
    return keep[0] > 0.5


# ----------------------------------------------------------------------------
# ProposalCreator.forward equivalent
# ----------------------------------------------------------------------------
def proposal_creator_forward(loc, score, anchor, img_size,
                             nms_thresh=0.7, min_size=16.0, training=True):
    """loc: (N,4) [dy,dx,dh,dw]; score: (N,); anchor: (N,4) [y1,x1,y2,x2];
    img_size: (H, W).  Returns (roi_out, num_kept): a fixed-size (n_out, 4)
    array whose first `num_kept` rows are the proposals (score-descending);
    the rest is zero padding."""
    n = loc.shape[0]
    n_pre = 12000 if training else 6000
    n_post = 2000 if training else 300
    blk = 128

    # pad N so the decode tile divides it (one big lane-dense tile for RPN sizes)
    n128 = ((n + blk - 1) // blk) * blk
    tn = min(n128, 8192)
    n_pad = ((n128 + tn - 1) // tn) * tn
    pad = n_pad - n
    anchor_t = jnp.pad(anchor.astype(jnp.float32), ((0, pad), (0, 0))).T   # (4, n_pad)
    loc_t = jnp.pad(loc.astype(jnp.float32), ((0, pad), (0, 0))).T         # (4, n_pad)
    score_p = jnp.pad(score.astype(jnp.float32), (0, pad))[None, :]        # (1, n_pad)

    # --- decode + clamp + min-size filter (Pallas) ---
    roi_t, mscore = decode_rois(anchor_t, loc_t, score_p,
                                img_size[0], img_size[1], min_size, tn)

    # --- score sort (descending) + pre-NMS cut (plain JAX / XLA top-k) ---
    k_pre = min(n_pre, n)
    vals, order = lax.top_k(mscore, k_pre)
    valid = jnp.isfinite(vals)                 # filtered / padded boxes are -inf

    k_pad = ((k_pre + blk - 1) // blk) * blk
    kp = k_pad - k_pre
    roi_sorted_t = jnp.pad(roi_t[:, order], ((0, 0), (0, kp)))             # (4, k_pad)
    valid_row = jnp.pad(valid, (0, kp)).astype(jnp.float32)[None, :]       # (1, k_pad)
    roi_sorted = roi_sorted_t.T                                            # (k_pad, 4) -- also used for output gather

    # --- fused blocked greedy NMS (Pallas) ---
    keep = fused_nms(roi_sorted, roi_sorted_t, valid_row, nms_thresh, blk)

    # --- post-NMS cut: compact the first n_post kept boxes (cumsum + searchsorted,
    #     no 12K stable sort) ---
    # TODO(synk): PyTorch returns a dynamically-sized roi tensor; JAX requires a
    # fixed shape, so we return a padded (n_out, 4) array plus the valid count.
    n_out = min(n_post, k_pad)
    csum = jnp.cumsum(keep.astype(jnp.int32))                              # nondecreasing
    gidx = jnp.searchsorted(csum, jnp.arange(1, n_out + 1, dtype=jnp.int32))
    valid_o = gidx < k_pad                                                 # slot p has a p-th kept box
    roi_out = jnp.where(valid_o[:, None],
                        roi_sorted[jnp.minimum(gidx, k_pad - 1)], 0.0)
    num_kept = jnp.minimum(csum[-1], n_out)
    return roi_out, num_kept


# ----------------------------------------------------------------------------
if __name__ == "__main__":
    key = jax.random.PRNGKey(0)
    k1, k2 = jax.random.split(key, 2)

    # small, deterministic problem: 16x16 feature map, 3 anchors per cell
    H, W = 64, 64
    fh, fw, A = 16, 16, 3
    N = fh * fw * A                       # 768 anchors

    ys = (jnp.arange(fh, dtype=jnp.float32) + 0.5) * (H / fh)
    xs = (jnp.arange(fw, dtype=jnp.float32) + 0.5) * (W / fw)
    sizes = jnp.array([12.0, 20.0, 32.0], jnp.float32)
    yy, xx, aa = jnp.meshgrid(ys, xs, jnp.arange(A), indexing="ij")
    s = sizes[aa]
    anchor = jnp.stack([yy - s / 2, xx - s / 2, yy + s / 2, xx + s / 2],
                       axis=-1).reshape(-1, 4)                      # (N, 4) y1,x1,y2,x2

    loc = 0.2 * jax.random.normal(k1, (N, 4), jnp.float32)          # (dy,dx,dh,dw)
    score = jax.random.normal(k2, (N,), jnp.float32)

    roi, num_kept = proposal_creator_forward(loc, score, anchor, (H, W),
                                             nms_thresh=0.7, min_size=16.0,
                                             training=True)
    jax.block_until_ready((roi, num_kept))
    print("KERNEL_OK")
</pallas_src>

<mosaic_0001>
module attributes {stable_mosaic.version = 11 : i64} {
  func.func @_decode_kernel(%arg0: i32, %arg1: memref<4x768xf32, #tpu.memory_space<vmem>>, %arg2: memref<4x768xf32, #tpu.memory_space<vmem>>, %arg3: memref<1x768xf32, #tpu.memory_space<vmem>>, %arg4: memref<4x768xf32, #tpu.memory_space<vmem>>, %arg5: memref<1x768xf32, #tpu.memory_space<vmem>>) attributes {dimension_semantics = [#tpu.dimension_semantics<parallel>], iteration_bounds = array<i64: 1>, scalar_prefetch = 0 : i64, scratch_operands = 0 : i64, tpu.core_type = #tpu.core_type<tc>, window_params = [{transform_indices = @transform_0, window_bounds = array<i64: 4, 768>}, {transform_indices = @transform_1, window_bounds = array<i64: 4, 768>}, {transform_indices = @transform_2, window_bounds = array<i64: 1, 768>}, {transform_indices = @transform_3, window_bounds = array<i64: 4, 768>}, {transform_indices = @transform_4, window_bounds = array<i64: 1, 768>}]} {
    %c0 = arith.constant 0 : index
    %c0_0 = arith.constant 0 : index
    %0 = vector.load %arg1[%c0, %c0_0] : memref<4x768xf32, #tpu.memory_space<vmem>>, vector<4x768xf32>
    %c0_1 = arith.constant 0 : index
    %c0_2 = arith.constant 0 : index
    %1 = vector.load %arg2[%c0_1, %c0_2] : memref<4x768xf32, #tpu.memory_space<vmem>>, vector<4x768xf32>
    %2 = vector.extract_strided_slice %0 {offsets = [0, 0], sizes = [1, 768], strides = [1, 1]} : vector<4x768xf32> to vector<1x768xf32>
    %3 = vector.extract_strided_slice %0 {offsets = [1, 0], sizes = [1, 768], strides = [1, 1]} : vector<4x768xf32> to vector<1x768xf32>
    %4 = vector.extract_strided_slice %0 {offsets = [2, 0], sizes = [1, 768], strides = [1, 1]} : vector<4x768xf32> to vector<1x768xf32>
    %5 = vector.extract_strided_slice %0 {offsets = [3, 0], sizes = [1, 768], strides = [1, 1]} : vector<4x768xf32> to vector<1x768xf32>
    %6 = vector.extract_strided_slice %1 {offsets = [0, 0], sizes = [1, 768], strides = [1, 1]} : vector<4x768xf32> to vector<1x768xf32>
    %7 = vector.extract_strided_slice %1 {offsets = [1, 0], sizes = [1, 768], strides = [1, 1]} : vector<4x768xf32> to vector<1x768xf32>
    %8 = vector.extract_strided_slice %1 {offsets = [2, 0], sizes = [1, 768], strides = [1, 1]} : vector<4x768xf32> to vector<1x768xf32>
    %9 = vector.extract_strided_slice %1 {offsets = [3, 0], sizes = [1, 768], strides = [1, 1]} : vector<4x768xf32> to vector<1x768xf32>
    %10 = arith.subf %4, %2 : vector<1x768xf32>
    %11 = arith.subf %5, %3 : vector<1x768xf32>
    %cst = arith.constant 5.000000e-01 : f32
    %12 = vector.broadcast %cst : f32 to vector<1x768xf32>
    %13 = arith.mulf %12, %10 : vector<1x768xf32>
    %14 = arith.addf %2, %13 : vector<1x768xf32>
    %cst_3 = arith.constant 5.000000e-01 : f32
    %15 = vector.broadcast %cst_3 : f32 to vector<1x768xf32>
    %16 = arith.mulf %15, %11 : vector<1x768xf32>
    %17 = arith.addf %3, %16 : vector<1x768xf32>
    %18 = arith.mulf %6, %10 : vector<1x768xf32>
    %19 = arith.addf %18, %14 : vector<1x768xf32>
    %20 = arith.mulf %7, %11 : vector<1x768xf32>
    %21 = arith.addf %20, %17 : vector<1x768xf32>
    %22 = math.exp %8 : vector<1x768xf32>
    %23 = arith.mulf %22, %10 : vector<1x768xf32>
    %24 = math.exp %9 : vector<1x768xf32>
    %25 = arith.mulf %24, %11 : vector<1x768xf32>
    %cst_4 = arith.constant 5.000000e-01 : f32
    %26 = vector.broadcast %cst_4 : f32 to vector<1x768xf32>
    %27 = arith.mulf %26, %23 : vector<1x768xf32>
    %28 = arith.subf %19, %27 : vector<1x768xf32>
    %cst_5 = arith.constant 0.000000e+00 : f32
    %cst_6 = arith.constant 6.400000e+01 : f32
    %29 = vector.broadcast %cst_5 : f32 to vector<1x768xf32>
    %30 = arith.maximumf %29, %28 : vector<1x768xf32>
    %31 = vector.broadcast %cst_6 : f32 to vector<1x768xf32>
    %32 = arith.minimumf %31, %30 : vector<1x768xf32>
    %cst_7 = arith.constant 5.000000e-01 : f32
    %33 = vector.broadcast %cst_7 : f32 to vector<1x768xf32>
    %34 = arith.mulf %33, %25 : vector<1x768xf32>
    %35 = arith.subf %21, %34 : vector<1x768xf32>
    %cst_8 = arith.constant 0.000000e+00 : f32
    %cst_9 = arith.constant 6.400000e+01 : f32
    %36 = vector.broadcast %cst_8 : f32 to vector<1x768xf32>
    %37 = arith.maximumf %36, %35 : vector<1x768xf32>
    %38 = vector.broadcast %cst_9 : f32 to vector<1x768xf32>
    %39 = arith.minimumf %38, %37 : vector<1x768xf32>
    %cst_10 = arith.constant 5.000000e-01 : f32
    %40 = vector.broadcast %cst_10 : f32 to vector<1x768xf32>
    %41 = arith.mulf %40, %23 : vector<1x768xf32>
    %42 = arith.addf %19, %41 : vector<1x768xf32>
    %cst_11 = arith.constant 0.000000e+00 : f32
    %cst_12 = arith.constant 6.400000e+01 : f32
    %43 = vector.broadcast %cst_11 : f32 to vector<1x768xf32>
    %44 = arith.maximumf %43, %42 : vector<1x768xf32>
    %45 = vector.broadcast %cst_12 : f32 to vector<1x768xf32>
    %46 = arith.minimumf %45, %44 : vector<1x768xf32>
    %cst_13 = arith.constant 5.000000e-01 : f32
    %47 = vector.broadcast %cst_13 : f32 to vector<1x768xf32>
    %48 = arith.mulf %47, %25 : vector<1x768xf32>
    %49 = arith.addf %21, %48 : vector<1x768xf32>
    %cst_14 = arith.constant 0.000000e+00 : f32
    %cst_15 = arith.constant 6.400000e+01 : f32
    %50 = vector.broadcast %cst_14 : f32 to vector<1x768xf32>
    %51 = arith.maximumf %50, %49 : vector<1x768xf32>
    %52 = vector.broadcast %cst_15 : f32 to vector<1x768xf32>
    %53 = arith.minimumf %52, %51 : vector<1x768xf32>
    %54 = arith.subf %46, %32 : vector<1x768xf32>
    %cst_16 = arith.constant 1.600000e+01 : f32
    %55 = vector.broadcast %cst_16 : f32 to vector<1x768xf32>
    %56 = arith.cmpf oge, %54, %55 : vector<1x768xf32>
    %57 = arith.subf %53, %39 : vector<1x768xf32>
    %cst_17 = arith.constant 1.600000e+01 : f32
    %58 = vector.broadcast %cst_17 : f32 to vector<1x768xf32>
    %59 = arith.cmpf oge, %57, %58 : vector<1x768xf32>
    %60 = arith.andi %56, %59 : vector<1x768xi1>
    %61 = tpu.concatenate %32, %39, %46, %53 in 0 : vector<1x768xf32>, vector<1x768xf32>, vector<1x768xf32>, vector<1x768xf32> -> vector<4x768xf32>
    %c0_18 = arith.constant 0 : index
    %c0_19 = arith.constant 0 : index
    %62 = vector.load %arg4[%c0_18, %c0_19] : memref<4x768xf32, #tpu.memory_space<vmem>>, vector<4x768xf32>
    tpu.vector_store %arg4[%c0_18, %c0_19], %61 {strides = array<i32>} : memref<4x768xf32, #tpu.memory_space<vmem>>, vector<4x768xf32>,
    %c0_20 = arith.constant 0 : index
    %c0_21 = arith.constant 0 : index
    %63 = vector.load %arg3[%c0_20, %c0_21] : memref<1x768xf32, #tpu.memory_space<vmem>>, vector<1x768xf32>
    %cst_22 = arith.constant 0xFF800000 : f32
    %64 = vector.broadcast %cst_22 : f32 to vector<1x768xf32>
    %65 = arith.select %60, %63, %64 : vector<1x768xi1>, vector<1x768xf32>
    %c0_23 = arith.constant 0 : index
    %c0_24 = arith.constant 0 : index
    %66 = vector.load %arg5[%c0_23, %c0_24] : memref<1x768xf32, #tpu.memory_space<vmem>>, vector<1x768xf32>
    tpu.vector_store %arg5[%c0_23, %c0_24], %65 {strides = array<i32>} : memref<1x768xf32, #tpu.memory_space<vmem>>, vector<1x768xf32>,
    return
  }
  func.func @transform_0(%arg0: i32) -> (i32, i32) {
    %c0_i32 = arith.constant 0 : i32
    %c0_i32_0 = arith.constant 0 : i32
    return %c0_i32, %arg0 : i32, i32
  }
  func.func @transform_1(%arg0: i32) -> (i32, i32) {
    %c0_i32 = arith.constant 0 : i32
    %c0_i32_0 = arith.constant 0 : i32
    return %c0_i32, %arg0 : i32, i32
  }
  func.func @transform_2(%arg0: i32) -> (i32, i32) {
    %c0_i32 = arith.constant 0 : i32
    %c0_i32_0 = arith.constant 0 : i32
    return %c0_i32, %arg0 : i32, i32
  }
  func.func @transform_3(%arg0: i32) -> (i32, i32) {
    %c0_i32 = arith.constant 0 : i32
    %c0_i32_0 = arith.constant 0 : i32
    return %c0_i32, %arg0 : i32, i32
  }
  func.func @transform_4(%arg0: i32) -> (i32, i32) {
    %c0_i32 = arith.constant 0 : i32
    %c0_i32_0 = arith.constant 0 : i32
    return %c0_i32, %arg0 : i32, i32
  }
}

</mosaic_0001>

<llo_original>
// kernel: tpu_custom_call.1
$region0: #{tpu_custom_call.1}
  #allocation0 [shape = 'u32[]', space=smem, size = 0x4, offset = 0x4, fixed_abs, tag = 'smem constant byte address 0x4 - core index']
  #allocation1 [shape = 'u32[72,128]{1,0:T(1,128)}', space=vmem, size = 0x9000, scoped, tag = 'internal scratch']
  %s0 = inlined_call_operand.hbm [shape: f32[4,768], index: 0, kind: input, shape index: {}]
  %s1 = inlined_call_operand.hbm [shape: f32[4,768], index: 1, kind: input, shape index: {}]
  %s2 = inlined_call_operand.hbm [shape: f32[1,768], index: 2, kind: input, shape index: {}]
  %s3 = inlined_call_operand.hbm [shape: f32[4,768], index: 3, kind: output, shape index: {0}]
  %s4 = inlined_call_operand.hbm [shape: f32[1,768], index: 4, kind: output, shape index: {1}]
  %5 = xla_tuple %s3, %s4
  %s6 = sld [smem:[#allocation0]]
  $region42: #{tpu_custom_call.1} parent=0
    _
  %s8 = ssub.s32 1, %s6
  %s9 = scalar_select 0, %s8, %s6
  $region1: #{tpu_custom_call.1} parent=0
    #allocation2 [shape = 'u8[12288]{0}', space=vmem, size = 0x3000, scoped, tag = 'input window, operand 0, single buffered']
    #allocation3 [shape = 's32[1]{0}', space=sflag, size = 0x4, scoped, tag = 'scoped memory for tpu_custom_call.1']
    #allocation4 [shape = 's32[1]{0}', space=sflag, size = 0x4, scoped, tag = 'scoped memory for tpu_custom_call.1']
    #allocation5 [shape = 'u8[12288]{0}', space=vmem, size = 0x3000, scoped, tag = 'input window, operand 1, single buffered']
    #allocation6 [shape = 's32[1]{0}', space=sflag, size = 0x4, scoped, tag = 'scoped memory for tpu_custom_call.1']
    #allocation7 [shape = 'u8[3072]{0}', space=vmem, size = 0xc00, scoped, tag = 'input window, operand 2, single buffered']
    #allocation8 [shape = 'u8[12288]{0}', space=vmem, size = 0x3000, scoped, tag = 'output window, operand 0, single buffered']
    #allocation9 [shape = 'u8[3072]{0}', space=vmem, size = 0xc00, scoped, tag = 'output window, operand 1, single buffered']
    #allocation10 [shape = 's32[1]{0}', space=sflag, size = 0x4, scoped, tag = 'scoped memory for tpu_custom_call.1']
    %10 = vsyncpa [#allocation3], 0
    %11 = vsyncpa [#allocation6], 0
    %12 = vsyncpa [#allocation4], 0
    %13 = vsyncpa [#allocation10], 0
    // Predicated region
    $region2: #{tpu_custom_call.1} parent=1 // pred_check
      _
    $region3: #{tpu_custom_call.1} parent=1 // pred_check_branch
      %15 = sbr.rel (0) target = $region5
    $region4: #{tpu_custom_call.1} parent=1 // pred_region
      %17 = vsyncadd [#allocation3], 0
      %s19 = sshll.u32 %s0, 4
      %s20 = int_to_ptr.hbm [resolvable:$true] %s19
      %s21 = sshll.u32 [#allocation2], 4
      %s22 = int_to_ptr.vmem [resolvable:$true] %s21
      %24 = dma.hbm_to_vmem [thread:$0]  %s20, 384, %s22, [#allocation3]
    $region5: #{tpu_custom_call.1} parent=1 // pred_fallthru
      _
    // Predicated region
    $region6: #{tpu_custom_call.1} parent=1 // pred_check
      _
    $region7: #{tpu_custom_call.1} parent=1 // pred_check_branch
      %26 = sbr.rel (0) target = $region9
    $region8: #{tpu_custom_call.1} parent=1 // pred_region
      %28 = vsyncadd [#allocation6], 0
      %s30 = sshll.u32 %s1, 4
      %s31 = int_to_ptr.hbm [resolvable:$true] %s30
      %s32 = sshll.u32 [#allocation5], 4
      %s33 = int_to_ptr.vmem [resolvable:$true] %s32
      %35 = dma.hbm_to_vmem [thread:$0]  %s31, 384, %s33, [#allocation6]
    $region9: #{tpu_custom_call.1} parent=1 // pred_fallthru
      _
    // Predicated region
    $region10: #{tpu_custom_call.1} parent=1 // pred_check
      _
    $region11: #{tpu_custom_call.1} parent=1 // pred_check_branch
      %37 = sbr.rel (0) target = $region13
    $region12: #{tpu_custom_call.1} parent=1 // pred_region
      %39 = vsyncadd [#allocation6], 0
      %s41 = sshll.u32 %s2, 4
      %s42 = int_to_ptr.hbm [resolvable:$true] %s41
      %s43 = sshll.u32 [#allocation7], 4
      %s44 = int_to_ptr.vmem [resolvable:$true] %s43
      %46 = dma.hbm_to_vmem [thread:$0]  %s42, 96, %s44, [#allocation6]
    $region13: #{tpu_custom_call.1} parent=1 // pred_fallthru
      _
    // Predicated region
    $region14: #{tpu_custom_call.1} parent=1 // pred_check
      _
    $region15: #{tpu_custom_call.1} parent=1 // pred_check_branch
      %48 = sbr.rel (0) target = $region17
    $region16: #{tpu_custom_call.1} parent=1 // pred_region
      %50 = dma.done [#allocation3], 384
    $region17: #{tpu_custom_call.1} parent=1 // pred_fallthru
      _
    // Predicated region
    $region18: #{tpu_custom_call.1} parent=1 // pred_check
      _
    $region19: #{tpu_custom_call.1} parent=1 // pred_check_branch
      %52 = sbr.rel (0) target = $region21
    $region20: #{tpu_custom_call.1} parent=1 // pred_region
      %54 = dma.done [#allocation6], 384
    $region21: #{tpu_custom_call.1} parent=1 // pred_fallthru
      _
    // Predicated region
    $region22: #{tpu_custom_call.1} parent=1 // pred_check
      _
    $region23: #{tpu_custom_call.1} parent=1 // pred_check_branch
      %56 = sbr.rel (0) target = $region25
    $region24: #{tpu_custom_call.1} parent=1 // pred_region
      %58 = dma.done [#allocation6], 96
    $region25: #{tpu_custom_call.1} parent=1 // pred_fallthru
      _
    %v59 = vld [vmem:[#allocation2] sm:$0xff]
    %v60 = vld [vmem:[#allocation2 + $0x8] sm:$0xff]
    %v61 = vld [vmem:[#allocation2 + $0x10] sm:$0xff]
    %v62 = vld [vmem:[#allocation5] sm:$0xff]
    %v63 = vld [vmem:[#allocation5 + $0x8] sm:$0xff]
    %v64 = vld [vmem:[#allocation5 + $0x10] sm:$0xff]
    %v68 = vrot.slane %v59, 6
    %v69 = vrot.slane %v60, 6
    %v70 = vrot.slane %v61, 6
    %v74 = vsub.f32 %v59, %v68
    %v75 = vsub.f32 %v60, %v69
    %v76 = vsub.f32 %v61, %v70
    %v77 = vmul.f32 %v74, 0.5
    %v78 = vmul.f32 %v75, 0.5
    %v79 = vmul.f32 %v76, 0.5
    %v83 = vrot.slane %v77, 6
    %v84 = vrot.slane %v83, 4
    %v85 = vrot.slane %v78, 6
    %v86 = vrot.slane %v85, 4
    %v87 = vrot.slane %v79, 6
    %v88 = vrot.slane %v87, 4
    %v92 = vadd.f32 %v59, %v84
    %v93 = vadd.f32 %v60, %v86
    %v94 = vadd.f32 %v61, %v88
    %v98 = vrot.slane %v74, 6
    %v99 = vrot.slane %v98, 4
    %v100 = vrot.slane %v75, 6
    %v101 = vrot.slane %v100, 4
    %v102 = vrot.slane %v76, 6
    %v103 = vrot.slane %v102, 4
    %v107 = vmul.f32 %v62, %v99
    %v108 = vmul.f32 %v63, %v101
    %v109 = vmul.f32 %v64, %v103
    %v110 = vadd.f32 %v107, %v92
    %v111 = vadd.f32 %v108, %v93
    %v112 = vadd.f32 %v109, %v94
    %v113 = vmul.f32 %v62, 1.442695
    %v114 = vpow.pop %v113
    %v115 = vmul.f32 %v63, 1.442695
    %v116 = vpow.pop %v115
    %v117 = vmul.f32 %v64, 1.442695
    %v118 = vpow.pop %v117
    %v119 = vmul.f32 %v114, %v74
    %v120 = vmul.f32 %v116, %v75
    %v121 = vmul.f32 %v118, %v76
    %v122 = vmul.f32 %v119, 0.5
    %v123 = vmul.f32 %v120, 0.5
    %v124 = vmul.f32 %v121, 0.5
    %v128 = vrot.slane %v122, 6
    %v129 = vrot.slane %v128, 4
    %v130 = vrot.slane %v123, 6
    %v131 = vrot.slane %v130, 4
    %v132 = vrot.slane %v124, 6
    %v133 = vrot.slane %v132, 4
    %v137 = vsub.f32 %v110, %v129
    %v138 = vsub.f32 %v111, %v131
    %v139 = vsub.f32 %v112, %v133
    %v140 = vmax.f32 %v137, 0.0
    %v141 = vmax.f32 %v138, 0.0
    %v142 = vmax.f32 %v139, 0.0
    %v143 = vmin.f32 %v140, 64.0
    %v144 = vmin.f32 %v141, 64.0
    %v145 = vmin.f32 %v142, 64.0
    %v146 = vadd.f32 %v110, %v129
    %v147 = vadd.f32 %v111, %v131
    %v148 = vadd.f32 %v112, %v133
    %v149 = vmax.f32 %v146, 0.0
    %v150 = vmax.f32 %v147, 0.0
    %v151 = vmax.f32 %v148, 0.0
    %v152 = vmin.f32 %v149, 64.0
    %v153 = vmin.f32 %v150, 64.0
    %v154 = vmin.f32 %v151, 64.0
    %v155 = vsub.f32 %v152, %v143
    %v156 = vsub.f32 %v153, %v144
    %v157 = vsub.f32 %v154, %v145
    %vm158 = vcmp.ge.f32.partialorder %v155, 16.0
    %vm159 = vcmp.ge.f32.partialorder %v156, 16.0
    %vm160 = vcmp.ge.f32.partialorder %v157, 16.0
    %v161 = vsel %vm158, 1, 0
    %v162 = vsel %vm159, 1, 0
    %v163 = vsel %vm160, 1, 0
    %v164 = vrot.slane %v161, 5
    %v165 = vrot.slane %v164, 4
    %v166 = vrot.slane %v162, 5
    %v167 = vrot.slane %v166, 4
    %v168 = vrot.slane %v163, 5
    %v169 = vrot.slane %v168, 4
    %vm170 = vcmp.ne.s32.totalorder %v165, 0
    %vm171 = vcmp.ne.s32.totalorder %v167, 0
    %vm172 = vcmp.ne.s32.totalorder %v169, 0
    %vm173 = vmand %vm158, %vm170
    %vm174 = vmand %vm159, %vm171
    %vm175 = vmand %vm160, %vm172
    %v179 = vperm.slane %v143, 0
    %v180 = vperm.slane %v143, 4
    %v181 = vperm.slane %v144, 0
    %v182 = vperm.slane %v144, 4
    %v183 = vperm.slane %v145, 0
    %v184 = vperm.slane %v145, 4
    %v191 = vperm.slane %v143, 1
    %v192 = vperm.slane %v143, 5
    %v193 = vperm.slane %v144, 1
    %v194 = vperm.slane %v144, 5
    %v195 = vperm.slane %v145, 1
    %v196 = vperm.slane %v145, 5
    %v206 = vperm.slane %v152, 0
    %v207 = vperm.slane %v152, 4
    %v208 = vperm.slane %v153, 0
    %v209 = vperm.slane %v153, 4
    %v210 = vperm.slane %v154, 0
    %v211 = vperm.slane %v154, 4
    %v218 = vperm.slane %v152, 1
    %v219 = vperm.slane %v152, 5
    %v220 = vperm.slane %v153, 1
    %v221 = vperm.slane %v153, 5
    %v222 = vperm.slane %v154, 1
    %v223 = vperm.slane %v154, 5
    %vm230 = vcmask 1040384
    %v231 = vsel %vm230, %v179, %v191
    %v232 = vsel %vm230, %v180, %v192
    %v233 = vsel %vm230, %v181, %v193
    %v234 = vsel %vm230, %v182, %v194
    %v235 = vsel %vm230, %v183, %v195
    %v236 = vsel %vm230, %v184, %v196
    %vm237 = vcmask 1041408
    %v238 = vsel %vm237, %v231, %v206
    %v239 = vsel %vm237, %v232, %v207
    %v240 = vsel %vm237, %v233, %v208
    %v241 = vsel %vm237, %v234, %v209
    %v242 = vsel %vm237, %v235, %v210
    %v243 = vsel %vm237, %v236, %v211
    %vm244 = vcmask 1042432
    %v245 = vsel %vm244, %v238, %v218
    %v246 = vsel %vm244, %v239, %v219
    %v247 = vsel %vm244, %v240, %v220
    %v248 = vsel %vm244, %v241, %v221
    %v249 = vsel %vm244, %v242, %v222
    %v250 = vsel %vm244, %v243, %v223
    %v257 = vrot.slane %v246, 4
    %v258 = vrot.slane %v248, 4
    %v259 = vrot.slane %v250, 4
    %vm260 = vcmask 1043456
    %v261 = vsel %vm260, %v245, %v257
    %v262 = vsel %vm260, %v247, %v258
    %v263 = vsel %vm260, %v249, %v259
    %267 = vst [vmem:[#allocation8] sm:$0xff] %v261
    %268 = vst [vmem:[#allocation8 + $0x8] sm:$0xff] %v262
    %269 = vst [vmem:[#allocation8 + $0x10] sm:$0xff] %v263
    %v270 = vld [vmem:[#allocation7] sm:$0x3f]
    %v273 = vunpack.c.l.s4 286326784
    %v274 = vunpack.c.0.s8 %v273
    %v275 = vperm.slane %v270, %v274
    %v277 = vunpack.c.l.s4 858989090
    %v278 = vunpack.c.0.s8 %v277
    %v279 = vperm.slane %v270, %v278
    %v281 = vunpack.c.l.s4 1431651396
    %v282 = vunpack.c.0.s8 %v281
    %v283 = vperm.slane %v270, %v282
    %v287 = vsel %vm173, %v275, -inf
    %v288 = vsel %vm174, %v279, -inf
    %v289 = vsel %vm175, %v283, -inf
    %v293 = vrot.slane %v287, 3
    %v294 = vrot.slane %v288, 6
    %v295 = vrot.slane %v288, 1
    %v296 = vrot.slane %v289, 4
    %v297 = vrot.slane %v289, 7
    %v298 = vsel %vm230, %v287, %v293
    %v299 = vsel %vm237, %v298, %v294
    %vm300 = vcmask 1043459
    %v301 = vsel %vm300, %v295, %v296
    %vm302 = vcmask 1044483
    %v303 = vsel %vm302, %v301, %v297
    %v304 = vsel %vm244, %v299, %v303
    %v306 = vlaneseq
    %vm307 = vcmp.ge.s32.totalorder %v306, 0
    %vm308 = vcmp.lt.s32.totalorder %v306, 768
    %vm309 = vmand %vm307, %vm308
    %310 = vst.msk [vmem:[#allocation9] sm:$0x3f] %vm309, %v304
    // Predicated region
    $region26: #{tpu_custom_call.1} parent=1 // pred_check
      _
    $region27: #{tpu_custom_call.1} parent=1 // pred_check_branch
      %312 = sbr.rel (0) target = $region29
    $region28: #{tpu_custom_call.1} parent=1 // pred_region
      %314 = vsyncadd [#allocation4], 0
      %s316 = sshll.u32 [#allocation8], 4
      %s317 = int_to_ptr.vmem [resolvable:$true] %s316
      %s318 = sshll.u32 %s3, 4
      %s319 = int_to_ptr.hbm [resolvable:$true] %s318
      %321 = dma.vmem_to_hbm [thread:$0]  %s317, 384, %s319, [#allocation4]
    $region29: #{tpu_custom_call.1} parent=1 // pred_fallthru
      _
    // Predicated region
    $region30: #{tpu_custom_call.1} parent=1 // pred_check
      _
    $region31: #{tpu_custom_call.1} parent=1 // pred_check_branch
      %323 = sbr.rel (0) target = $region33
    $region32: #{tpu_custom_call.1} parent=1 // pred_region
      %325 = vsyncadd [#allocation10], 0
      %s327 = sshll.u32 [#allocation9], 4
      %s328 = int_to_ptr.vmem [resolvable:$true] %s327
      %s329 = sshll.u32 %s4, 4
      %s330 = int_to_ptr.hbm [resolvable:$true] %s329
      %332 = dma.vmem_to_hbm [thread:$0]  %s328, 96, %s330, [#allocation10]
    $region33: #{tpu_custom_call.1} parent=1 // pred_fallthru
      _
    // Predicated region
    $region34: #{tpu_custom_call.1} parent=1 // pred_check
      _
    $region35: #{tpu_custom_call.1} parent=1 // pred_check_branch
      %334 = sbr.rel (0) target = $region37
    $region36: #{tpu_custom_call.1} parent=1 // pred_region
      %336 = dma.done [#allocation4], 384
    $region37: #{tpu_custom_call.1} parent=1 // pred_fallthru
      _
    // Predicated region
    $region38: #{tpu_custom_call.1} parent=1 // pred_check
      _
    $region39: #{tpu_custom_call.1} parent=1 // pred_check_branch
      %338 = sbr.rel (0) target = $region41
    $region40: #{tpu_custom_call.1} parent=1 // pred_region
      %340 = dma.done [#allocation10], 96
    $region41: #{tpu_custom_call.1} parent=1 // pred_fallthru
      _
    %341 = vsyncpa [#allocation3], 1
    %342 = vsyncpa [#allocation6], 1
    %343 = vsyncpa [#allocation4], 1
    %344 = vsyncpa [#allocation10], 1

</llo_original>
